<compile_context>
chip_gen: v5e
topology: v5e:2x2
jax: 0.10.0
libtpu: 0.0.40
codegen_flags: <defaults>
</compile_context>

<pallas_src>
import functools

import jax
import jax.numpy as jnp
from jax.experimental import pallas as pl
from jax.experimental.pallas import tpu as pltpu


def _round_up(x, m):
    return (x + m - 1) // m * m


def _ffn_kernel(x_ref, w1_ref, b1_ref, w2_ref, b2_ref, g_ref, beta_ref,
                o_ref, acc_ref, *, d_inv, d_real, needs_mask, eps):
    """Grid = (row_tiles, f_chunks).  x is a (TILE_M, D) row tile resident across the
    f axis; W1/W2 arrive in streamed chunks; residual + LayerNorm run on the last
    f chunk only."""
    f = pl.program_id(1)

    @pl.when(f == 0)
    def _():
        acc_ref[...] = jnp.zeros_like(acc_ref)

    x = x_ref[...]  # native dtype -> full-rate MXU path for bf16 inputs

    # linear1 chunk (+ bias) + relu; one cast to the second matmul's dtype so only a
    # single (TILE_M, TILE_F) copy of the hidden activations stays live.
    h = jnp.dot(x, w1_ref[...], preferred_element_type=jnp.float32)
    h = jnp.maximum(h + b1_ref[...].astype(jnp.float32), 0.0).astype(w2_ref.dtype)

    # linear2 chunk, accumulated in f32 VMEM scratch.  (dropout p=0.0 -> identity)
    acc_ref[...] += jnp.dot(h, w2_ref[...], preferred_element_type=jnp.float32)

    @pl.when(f == pl.num_programs(1) - 1)
    def _():
        # residual + LayerNorm (eps), f32 math, two-pass statistics.
        y = x.astype(jnp.float32) + acc_ref[...] + b2_ref[...].astype(jnp.float32)
        mean = jnp.sum(y, axis=-1, keepdims=True) * d_inv
        yc = y - mean
        if needs_mask:  # compile-time branch: zero the padded feature lanes
            lane = jax.lax.broadcasted_iota(jnp.int32, yc.shape, 1)
            yc = jnp.where(lane < d_real, yc, 0.0)
        var = jnp.sum(yc * yc, axis=-1, keepdims=True) * d_inv
        out = yc * jax.lax.rsqrt(var + eps)
        out = out * g_ref[...].astype(jnp.float32) + beta_ref[...].astype(jnp.float32)
        o_ref[...] = out.astype(o_ref.dtype)


def _vmem_limit_bytes():
    """Generation-aware scoped-VMEM request (~3/4 of physical capacity):
    ~96 MiB on v5e/v6e (128 MiB physical), ~48 MiB on v7x (64 MiB physical)."""
    try:
        cap = int(pltpu.get_tpu_info().vmem_capacity_bytes)
    except Exception:
        cap = 64 * 1024 * 1024
    return max(32 * 1024 * 1024, (cap * 3) // 4)


def _pick_tile_m(n_rows, d_pad, tile_f, x_bytes, w_bytes, budget_bytes):
    """Largest MXU-friendly row tile whose pipeline footprint fits the budget.
    The grid uses cdiv, so the tile does NOT have to divide n_rows (Pallas handles
    the partial tail block)."""
    n8 = _round_up(n_rows, 8)
    # Resident/pipelined independent of tile_m: streamed weight chunks (x2 buffers),
    # streamed b1 chunk (x2), and the constant b2/gamma/beta rows (x2).
    fixed = 2 * 2 * d_pad * tile_f * w_bytes
    fixed += 2 * 2 * tile_f * w_bytes
    fixed += 2 * 3 * d_pad * w_bytes
    chosen = min(n8, 256)
    # Prefer multiples of 256 (full 2x256^2 MXU fill on v6e/v7x; fine on v5e too).
    for cand in (2048, 1024, 512, 256):
        if cand > n8:
            continue
        per = 2 * 2 * cand * d_pad * x_bytes          # x + out tiles, double-buffered
        per += cand * d_pad * 4                       # f32 accumulator scratch
        per += cand * tile_f * (4 + w_bytes)          # h (f32) + its cast copy
        if fixed + per <= budget_bytes:
            chosen = cand
            break
    return min(chosen, n8)


def ffn_layer(tgt, w1, b1, w2, b2, gamma, beta, *, tile_m=None, tile_f=None, eps=1e-5):
    """FFNLayer.forward_post: LayerNorm(tgt + W2 @ relu(W1 @ tgt + b1) + b2).
    tgt: (seq, batch, d_model).  Returns the same shape/dtype."""
    S, B, D = tgt.shape
    F = w1.shape[1]
    N = S * B

    # Lane-dense feature dims: pad d_model / dim_feedforward to multiples of 128.
    D_pad = _round_up(max(D, 128), 128)
    F_128 = _round_up(max(F, 128), 128)
    if tile_f is None:
        tile_f = 512 if F_128 % 512 == 0 else (256 if F_128 % 256 == 0 else 128)
    tile_f = min(tile_f, F_128)
    F_pad = _round_up(F_128, tile_f)
    N8 = _round_up(N, 8)

    vmem_limit = _vmem_limit_bytes()
    x_bytes = jnp.dtype(tgt.dtype).itemsize
    w_bytes = jnp.dtype(w1.dtype).itemsize
    if tile_m is None:
        tile_m = _pick_tile_m(N, D_pad, tile_f, x_bytes, w_bytes,
                              (vmem_limit * 3) // 4)     # headroom under the limit
        # Keep >= 2 row-grid steps so the "parallel" axis can shard across the two
        # TensorCores of a v7x megacore (harmless on single-TC v5e/v6e).
        if N8 >= 512:
            tile_m = min(tile_m, _round_up(pl.cdiv(N8, 2), 256))
    tile_m = max(8, min(_round_up(tile_m, 8), N8))

    x2d = tgt.reshape(N, D)
    if N8 != N or D_pad != D:
        x2d = jnp.pad(x2d, ((0, N8 - N), (0, D_pad - D)))
    if D_pad != D or F_pad != F:
        # Zero padding keeps the padded feature/hidden lanes exactly zero end-to-end.
        w1 = jnp.pad(w1, ((0, D_pad - D), (0, F_pad - F)))
        b1 = jnp.pad(b1, ((0, 0), (0, F_pad - F)))
        w2 = jnp.pad(w2, ((0, F_pad - F), (0, D_pad - D)))
        b2 = jnp.pad(b2, ((0, 0), (0, D_pad - D)))
        gamma = jnp.pad(gamma, ((0, 0), (0, D_pad - D)))
        beta = jnp.pad(beta, ((0, 0), (0, D_pad - D)))

    grid = (pl.cdiv(N8, tile_m), F_pad // tile_f)

    kernel = functools.partial(_ffn_kernel, d_inv=1.0 / D, d_real=D,
                               needs_mask=(D_pad != D), eps=eps)

    out2d = pl.pallas_call(
        kernel,
        out_shape=jax.ShapeDtypeStruct((N8, D_pad), tgt.dtype),
        grid=grid,
        in_specs=[
            pl.BlockSpec((tile_m, D_pad), lambda i, f: (i, 0)),   # x rows (resident across f)
            pl.BlockSpec((D_pad, tile_f), lambda i, f: (0, f)),   # w1 chunk (streamed)
            pl.BlockSpec((1, tile_f), lambda i, f: (0, f)),       # b1 chunk (streamed)
            pl.BlockSpec((tile_f, D_pad), lambda i, f: (f, 0)),   # w2 chunk (streamed)
            pl.BlockSpec((1, D_pad), lambda i, f: (0, 0)),        # b2
            pl.BlockSpec((1, D_pad), lambda i, f: (0, 0)),        # gamma
            pl.BlockSpec((1, D_pad), lambda i, f: (0, 0)),        # beta
        ],
        out_specs=pl.BlockSpec((tile_m, D_pad), lambda i, f: (i, 0)),
        scratch_shapes=[pltpu.VMEM((tile_m, D_pad), jnp.float32)],
        compiler_params=pltpu.CompilerParams(
            dimension_semantics=("parallel", "arbitrary"),
            vmem_limit_bytes=vmem_limit,
        ),
    )(x2d, w1, b1, w2, b2, gamma, beta)

    if N8 != N or D_pad != D:
        out2d = out2d[:N, :D]
    return out2d.reshape(S, B, D)


def _xavier_uniform(key, shape):
    fan_in, fan_out = shape[0], shape[1]
    bound = (6.0 / (fan_in + fan_out)) ** 0.5
    return jax.random.uniform(key, shape, jnp.float32, -bound, bound)


def _ffn_reference(tgt, w1, b1, w2, b2, gamma, beta):
    h = jnp.maximum(jnp.dot(tgt, w1) + b1[0], 0.0)
    tgt2 = jnp.dot(h, w2) + b2[0]
    y = tgt + tgt2
    mean = jnp.mean(y, axis=-1, keepdims=True)
    var = jnp.mean((y - mean) ** 2, axis=-1, keepdims=True)
    return (y - mean) * jax.lax.rsqrt(var + 1e-5) * gamma[0] + beta[0]


if __name__ == "__main__":
    # Small shapes consistent with the decoder's FFN: num_queries(seq)=8, batch=2,
    # hidden_dim=32, dim_feedforward=64.  (Production: 256 / 2048, N = 100*B.)
    S, B, D, FF = 8, 2, 32, 64

    key = jax.random.PRNGKey(0)
    k_x, k_w1, k_b1, k_w2, k_b2, k_w1b, k_w2b = jax.random.split(key, 7)

    tgt = jax.random.normal(k_x, (S, B, D), jnp.float32)

    # linear weights: xavier_uniform (as in _reset_parameters), stored (in, out).
    w1 = _xavier_uniform(k_w1, (D, FF))
    w2 = _xavier_uniform(k_w2, (FF, D))
    # biases: PyTorch default uniform(-1/sqrt(fan_in), 1/sqrt(fan_in))
    b1 = jax.random.uniform(k_b1, (1, FF), jnp.float32, -1.0 / D ** 0.5, 1.0 / D ** 0.5)
    b2 = jax.random.uniform(k_b2, (1, D), jnp.float32, -1.0 / FF ** 0.5, 1.0 / FF ** 0.5)
    gamma = jnp.ones((1, D), jnp.float32)
    beta = jnp.zeros((1, D), jnp.float32)

    ref = _ffn_reference(tgt, w1, b1, w2, b2, gamma, beta)

    # 1) automatic (VMEM-budget-driven) tile selection.
    out_auto = jax.block_until_ready(ffn_layer(tgt, w1, b1, w2, b2, gamma, beta))
    assert out_auto.shape == tgt.shape and out_auto.dtype == tgt.dtype
    assert jnp.allclose(out_auto, ref, atol=1e-4, rtol=1e-4)

    # 2) forced 2-step row grid to exercise pipelined row tiling + accumulator reset.
    out_rows = jax.block_until_ready(
        ffn_layer(tgt, w1, b1, w2, b2, gamma, beta, tile_m=8))
    assert jnp.allclose(out_rows, ref, atol=1e-4, rtol=1e-4)

    # 3) wider FFN with forced F-chunking (2 streamed weight chunks + f accumulation).
    FF2 = 256
    w1b = _xavier_uniform(k_w1b, (D, FF2))
    w2b = _xavier_uniform(k_w2b, (FF2, D))
    b1b = jnp.zeros((1, FF2), jnp.float32)
    refb = _ffn_reference(tgt, w1b, b1b, w2b, b2, gamma, beta)
    outb = jax.block_until_ready(
        ffn_layer(tgt, w1b, b1b, w2b, b2, gamma, beta, tile_m=8, tile_f=128))
    assert jnp.allclose(outb, refb, atol=1e-4, rtol=1e-4)

    # 4) bf16 activations/weights: operands hit the MXU as bf16 (f32 accumulation).
    out_bf16 = jax.block_until_ready(ffn_layer(
        tgt.astype(jnp.bfloat16), w1.astype(jnp.bfloat16), b1.astype(jnp.bfloat16),
        w2.astype(jnp.bfloat16), b2.astype(jnp.bfloat16),
        gamma.astype(jnp.bfloat16), beta.astype(jnp.bfloat16), tile_m=8))
    assert out_bf16.shape == tgt.shape and out_bf16.dtype == jnp.bfloat16
    assert jnp.allclose(out_bf16.astype(jnp.float32), ref, atol=1e-1, rtol=1e-1)

    print("KERNEL_OK")
</pallas_src>

<mosaic_0001>
module attributes {stable_mosaic.version = 11 : i64} {
  func.func @_ffn_kernel(%arg0: i32, %arg1: i32, %arg2: memref<16x128xf32, #tpu.memory_space<vmem>>, %arg3: memref<128x128xf32, #tpu.memory_space<vmem>>, %arg4: memref<1x128xf32, #tpu.memory_space<vmem>>, %arg5: memref<128x128xf32, #tpu.memory_space<vmem>>, %arg6: memref<1x128xf32, #tpu.memory_space<vmem>>, %arg7: memref<1x128xf32, #tpu.memory_space<vmem>>, %arg8: memref<1x128xf32, #tpu.memory_space<vmem>>, %arg9: memref<16x128xf32, #tpu.memory_space<vmem>>, %arg10: memref<16x128xf32, #tpu.memory_space<vmem>>) attributes {dimension_semantics = [#tpu.dimension_semantics<parallel>, #tpu.dimension_semantics<arbitrary>], iteration_bounds = array<i64: 1, 1>, scalar_prefetch = 0 : i64, scratch_operands = 1 : i64, tpu.core_type = #tpu.core_type<tc>, window_params = [{transform_indices = @transform_0, window_bounds = array<i64: 16, 128>}, {transform_indices = @transform_1, window_bounds = array<i64: 128, 128>}, {transform_indices = @transform_2, window_bounds = array<i64: 1, 128>}, {transform_indices = @transform_3, window_bounds = array<i64: 128, 128>}, {pipeline_mode = #tpu.pipeline_mode<synchronous>, transform_indices = @transform_4, window_bounds = array<i64: 1, 128>}, {pipeline_mode = #tpu.pipeline_mode<synchronous>, transform_indices = @transform_5, window_bounds = array<i64: 1, 128>}, {pipeline_mode = #tpu.pipeline_mode<synchronous>, transform_indices = @transform_6, window_bounds = array<i64: 1, 128>}, {transform_indices = @transform_7, window_bounds = array<i64: 16, 128>}]} {
    %c0_i32 = arith.constant 0 : i32
    %0 = arith.cmpi eq, %arg1, %c0_i32 : i32
    %1 = arith.extui %0 : i1 to i32
    %c0_i32_0 = arith.constant 0 : i32
    %2 = arith.cmpi ne, %1, %c0_i32_0 : i32
    scf.if %2 {
      %cst_16 = arith.constant 0.000000e+00 : f32
      %19 = vector.broadcast %cst_16 : f32 to vector<16x128xf32>
      %c0_17 = arith.constant 0 : index
      %c0_18 = arith.constant 0 : index
      %20 = vector.load %arg10[%c0_17, %c0_18] : memref<16x128xf32, #tpu.memory_space<vmem>>, vector<16x128xf32>
      tpu.vector_store %arg10[%c0_17, %c0_18], %19 {strides = array<i32>} : memref<16x128xf32, #tpu.memory_space<vmem>>, vector<16x128xf32>,
    } else {
    }
    %c0 = arith.constant 0 : index
    %c0_1 = arith.constant 0 : index
    %3 = vector.load %arg2[%c0, %c0_1] : memref<16x128xf32, #tpu.memory_space<vmem>>, vector<16x128xf32>
    %c0_2 = arith.constant 0 : index
    %c0_3 = arith.constant 0 : index
    %4 = vector.load %arg3[%c0_2, %c0_3] : memref<128x128xf32, #tpu.memory_space<vmem>>, vector<128x128xf32>
    %cst = arith.constant dense<0.000000e+00> : vector<16x128xf32>
    %5 = tpu.matmul %3, %4, %cst {dimension_numbers = #tpu.dot_dimension_numbers<[1], [0], [0], [1], [0, 0, 1, 1], [], []>} : vector<16x128xf32>, vector<128x128xf32>, vector<16x128xf32> -> vector<16x128xf32>
    %c0_4 = arith.constant 0 : index
    %c0_5 = arith.constant 0 : index
    %6 = vector.load %arg4[%c0_4, %c0_5] : memref<1x128xf32, #tpu.memory_space<vmem>>, vector<1x128xf32>
    %7 = vector.broadcast %6 : vector<1x128xf32> to vector<16x128xf32>
    %8 = arith.addf %5, %7 : vector<16x128xf32>
    %cst_6 = arith.constant 0.000000e+00 : f32
    %9 = vector.broadcast %cst_6 : f32 to vector<16x128xf32>
    %10 = arith.maximumf %8, %9 : vector<16x128xf32>
    %c0_7 = arith.constant 0 : index
    %c0_8 = arith.constant 0 : index
    %11 = vector.load %arg10[%c0_7, %c0_8] : memref<16x128xf32, #tpu.memory_space<vmem>>, vector<16x128xf32>
    %c0_9 = arith.constant 0 : index
    %c0_10 = arith.constant 0 : index
    %12 = vector.load %arg5[%c0_9, %c0_10] : memref<128x128xf32, #tpu.memory_space<vmem>>, vector<128x128xf32>
    %cst_11 = arith.constant dense<0.000000e+00> : vector<16x128xf32>
    %13 = tpu.matmul %10, %12, %cst_11 {dimension_numbers = #tpu.dot_dimension_numbers<[1], [0], [0], [1], [0, 0, 1, 1], [], []>} : vector<16x128xf32>, vector<128x128xf32>, vector<16x128xf32> -> vector<16x128xf32>
    %14 = arith.addf %11, %13 : vector<16x128xf32>
    %c0_12 = arith.constant 0 : index
    %c0_13 = arith.constant 0 : index
    %15 = vector.load %arg10[%c0_12, %c0_13] : memref<16x128xf32, #tpu.memory_space<vmem>>, vector<16x128xf32>
    tpu.vector_store %arg10[%c0_12, %c0_13], %14 {strides = array<i32>} : memref<16x128xf32, #tpu.memory_space<vmem>>, vector<16x128xf32>,
    %c0_i32_14 = arith.constant 0 : i32
    %16 = arith.cmpi eq, %arg1, %c0_i32_14 : i32
    %17 = arith.extui %16 : i1 to i32
    %c0_i32_15 = arith.constant 0 : i32
    %18 = arith.cmpi ne, %17, %c0_i32_15 : i32
    scf.if %18 {
      %c0_16 = arith.constant 0 : index
      %c0_17 = arith.constant 0 : index
      %19 = vector.load %arg10[%c0_16, %c0_17] : memref<16x128xf32, #tpu.memory_space<vmem>>, vector<16x128xf32>
      %20 = arith.addf %3, %19 : vector<16x128xf32>
      %c0_18 = arith.constant 0 : index
      %c0_19 = arith.constant 0 : index
      %21 = vector.load %arg6[%c0_18, %c0_19] : memref<1x128xf32, #tpu.memory_space<vmem>>, vector<1x128xf32>
      %22 = vector.broadcast %21 : vector<1x128xf32> to vector<16x128xf32>
      %23 = arith.addf %20, %22 : vector<16x128xf32>
      %cst_20 = arith.constant dense<0.000000e+00> : vector<16xf32>
      %24 = vector.multi_reduction <add>, %23, %cst_20 [1] : vector<16x128xf32> to vector<16xf32>
      %25 = vector.shape_cast %24 : vector<16xf32> to vector<16x1xf32>
      %cst_21 = arith.constant 3.125000e-02 : f32
      %26 = vector.broadcast %cst_21 : f32 to vector<16x1xf32>
      %27 = arith.mulf %25, %26 : vector<16x1xf32>
      %28 = vector.broadcast %27 : vector<16x1xf32> to vector<16x128xf32>
      %29 = arith.subf %23, %28 : vector<16x128xf32>
      %30 = tpu.iota {dimensions = array<i32: 1>} : vector<16x128xi32>
      %c32_i32 = arith.constant 32 : i32
      %31 = vector.broadcast %c32_i32 : i32 to vector<16x128xi32>
      %32 = arith.cmpi slt, %30, %31 : vector<16x128xi32>
      %cst_22 = arith.constant 0.000000e+00 : f32
      %33 = vector.broadcast %cst_22 : f32 to vector<16x128xf32>
      %34 = arith.select %32, %29, %33 : vector<16x128xi1>, vector<16x128xf32>
      %35 = arith.mulf %34, %34 : vector<16x128xf32>
      %cst_23 = arith.constant dense<0.000000e+00> : vector<16xf32>
      %36 = vector.multi_reduction <add>, %35, %cst_23 [1] : vector<16x128xf32> to vector<16xf32>
      %37 = vector.shape_cast %36 : vector<16xf32> to vector<16x1xf32>
      %cst_24 = arith.constant 3.125000e-02 : f32
      %38 = vector.broadcast %cst_24 : f32 to vector<16x1xf32>
      %39 = arith.mulf %37, %38 : vector<16x1xf32>
      %cst_25 = arith.constant 9.99999974E-6 : f32
      %40 = vector.broadcast %cst_25 : f32 to vector<16x1xf32>
      %41 = arith.addf %39, %40 : vector<16x1xf32>
      %42 = math.rsqrt %41 : vector<16x1xf32>
      %43 = vector.broadcast %42 : vector<16x1xf32> to vector<16x128xf32>
      %44 = arith.mulf %34, %43 : vector<16x128xf32>
      %c0_26 = arith.constant 0 : index
      %c0_27 = arith.constant 0 : index
      %45 = vector.load %arg7[%c0_26, %c0_27] : memref<1x128xf32, #tpu.memory_space<vmem>>, vector<1x128xf32>
      %46 = vector.broadcast %45 : vector<1x128xf32> to vector<16x128xf32>
      %47 = arith.mulf %44, %46 : vector<16x128xf32>
      %c0_28 = arith.constant 0 : index
      %c0_29 = arith.constant 0 : index
      %48 = vector.load %arg8[%c0_28, %c0_29] : memref<1x128xf32, #tpu.memory_space<vmem>>, vector<1x128xf32>
      %49 = vector.broadcast %48 : vector<1x128xf32> to vector<16x128xf32>
      %50 = arith.addf %47, %49 : vector<16x128xf32>
      %c0_30 = arith.constant 0 : index
      %c0_31 = arith.constant 0 : index
      %51 = vector.load %arg9[%c0_30, %c0_31] : memref<16x128xf32, #tpu.memory_space<vmem>>, vector<16x128xf32>
      tpu.vector_store %arg9[%c0_30, %c0_31], %50 {strides = array<i32>} : memref<16x128xf32, #tpu.memory_space<vmem>>, vector<16x128xf32>,
    } else {
    }
    return
  }
  func.func @transform_0(%arg0: i32, %arg1: i32) -> (i32, i32) {
    %c0_i32 = arith.constant 0 : i32
    %c0_i32_0 = arith.constant 0 : i32
    return %arg0, %c0_i32 : i32, i32
  }
  func.func @transform_1(%arg0: i32, %arg1: i32) -> (i32, i32) {
    %c0_i32 = arith.constant 0 : i32
    %c0_i32_0 = arith.constant 0 : i32
    return %c0_i32, %arg1 : i32, i32
  }
  func.func @transform_2(%arg0: i32, %arg1: i32) -> (i32, i32) {
    %c0_i32 = arith.constant 0 : i32
    %c0_i32_0 = arith.constant 0 : i32
    return %c0_i32, %arg1 : i32, i32
  }
  func.func @transform_3(%arg0: i32, %arg1: i32) -> (i32, i32) {
    %c0_i32 = arith.constant 0 : i32
    %c0_i32_0 = arith.constant 0 : i32
    return %arg1, %c0_i32 : i32, i32
  }
  func.func @transform_4(%arg0: i32, %arg1: i32) -> (i32, i32) {
    %c0_i32 = arith.constant 0 : i32
    %c0_i32_0 = arith.constant 0 : i32
    %c0_i32_1 = arith.constant 0 : i32
    return %c0_i32, %c0_i32_0 : i32, i32
  }
  func.func @transform_5(%arg0: i32, %arg1: i32) -> (i32, i32) {
    %c0_i32 = arith.constant 0 : i32
    %c0_i32_0 = arith.constant 0 : i32
    %c0_i32_1 = arith.constant 0 : i32
    return %c0_i32, %c0_i32_0 : i32, i32
  }
  func.func @transform_6(%arg0: i32, %arg1: i32) -> (i32, i32) {
    %c0_i32 = arith.constant 0 : i32
    %c0_i32_0 = arith.constant 0 : i32
    %c0_i32_1 = arith.constant 0 : i32
    return %c0_i32, %c0_i32_0 : i32, i32
  }
  func.func @transform_7(%arg0: i32, %arg1: i32) -> (i32, i32) {
    %c0_i32 = arith.constant 0 : i32
    %c0_i32_0 = arith.constant 0 : i32
    return %arg0, %c0_i32 : i32, i32
  }
}

</mosaic_0001>

<llo_original>
// kernel: tpu_custom_call.1
$region0: #{tpu_custom_call.1}
  #allocation0 [shape = 'u32[]', space=smem, size = 0x4, offset = 0x4, fixed_abs, tag = 'smem constant byte address 0x4 - core index']
  #allocation1 [shape = 'u32[72,128]{1,0:T(1,128)}', space=vmem, size = 0x9000, scoped, tag = 'internal scratch']
  #allocation2 [shape = 'f32[16,128]{1,0:T(8,128)}', space=vmem, size = 0x2000, scoped, tag = 'scratch operand']
  %s0 = inlined_call_operand.hbm [shape: f32[16,128], index: 0, kind: input, shape index: {}]
  %s1 = inlined_call_operand.hbm [shape: f32[128,128], index: 1, kind: input, shape index: {}]
  %s2 = inlined_call_operand.vmem [shape: f32[1,128], index: 2, kind: input, shape index: {}]
  %s3 = inlined_call_operand.hbm [shape: f32[128,128], index: 3, kind: input, shape index: {}]
  %s4 = inlined_call_operand.vmem [shape: f32[1,128], index: 4, kind: input, shape index: {}]
  %s5 = inlined_call_operand.vmem [shape: f32[1,128], index: 5, kind: input, shape index: {}]
  %s6 = inlined_call_operand.vmem [shape: f32[1,128], index: 6, kind: input, shape index: {}]
  %s7 = inlined_call_operand.hbm [shape: f32[16,128], index: 7, kind: output, shape index: {}]
  %s8 = sld [smem:[#allocation0]]
  $region58: #{tpu_custom_call.1} parent=0
    _
  %s10 = ssub.s32 1, %s8
  %s11 = scalar_select 0, %s10, %s8
  $region1: #{tpu_custom_call.1} parent=0
    #allocation3 [shape = 'u8[8192]{0}', space=vmem, size = 0x2000, scoped, tag = 'input window, operand 0, single buffered']
    #allocation4 [shape = 's32[1]{0}', space=sflag, size = 0x4, scoped, tag = 'scoped memory for tpu_custom_call.1']
    #allocation5 [shape = 's32[1]{0}', space=sflag, size = 0x4, scoped, tag = 'scoped memory for tpu_custom_call.1']
    #allocation6 [shape = 'u8[65536]{0}', space=vmem, size = 0x10000, scoped, tag = 'input window, operand 1, single buffered']
    #allocation7 [shape = 's32[1]{0}', space=sflag, size = 0x4, scoped, tag = 'scoped memory for tpu_custom_call.1']
    #allocation8 [shape = 'u8[65536]{0}', space=vmem, size = 0x10000, scoped, tag = 'input window, operand 3, single buffered']
    #allocation9 [shape = 'u8[8192]{0}', space=vmem, size = 0x2000, scoped, tag = 'output window, operand 0, single buffered']
    %12 = vsyncpa [#allocation4], 0
    %13 = vsyncpa [#allocation7], 0
    %14 = vsyncpa [#allocation5], 0
    // Predicated region
    $region2: #{tpu_custom_call.1} parent=1 // pred_check
      _
    $region3: #{tpu_custom_call.1} parent=1 // pred_check_branch
      %16 = sbr.rel (0) target = $region5
    $region4: #{tpu_custom_call.1} parent=1 // pred_region
      %18 = vsyncadd [#allocation4], 0
      %s19 = sshll.u32 %s0, 4
      %s20 = int_to_ptr.hbm [resolvable:$true] %s19
      %s21 = sshll.u32 [#allocation3], 4
      %s22 = int_to_ptr.vmem [resolvable:$true] %s21
      %27 = dma.hbm_to_vmem [thread:$0]  %s20, 256, %s22, [#allocation4], 128, 128, 8
    $region5: #{tpu_custom_call.1} parent=1 // pred_fallthru
      _
    // Predicated region
    $region6: #{tpu_custom_call.1} parent=1 // pred_check
      _
    $region7: #{tpu_custom_call.1} parent=1 // pred_check_branch
      %29 = sbr.rel (0) target = $region9
    $region8: #{tpu_custom_call.1} parent=1 // pred_region
      %31 = vsyncadd [#allocation7], 0
      %s32 = sshll.u32 %s1, 4
      %s33 = int_to_ptr.hbm [resolvable:$true] %s32
      %s34 = sshll.u32 [#allocation6], 4
      %s35 = int_to_ptr.vmem [resolvable:$true] %s34
      %40 = dma.hbm_to_vmem [thread:$0]  %s33, 2048, %s35, [#allocation7], 128, 128, 8
    $region9: #{tpu_custom_call.1} parent=1 // pred_fallthru
      _
    // Predicated region
    $region10: #{tpu_custom_call.1} parent=1 // pred_check
      _
    $region11: #{tpu_custom_call.1} parent=1 // pred_check_branch
      %42 = sbr.rel (0) target = $region13
    $region12: #{tpu_custom_call.1} parent=1 // pred_region
      _
    $region13: #{tpu_custom_call.1} parent=1 // pred_fallthru
      _
    // Predicated region
    $region14: #{tpu_custom_call.1} parent=1 // pred_check
      _
    $region15: #{tpu_custom_call.1} parent=1 // pred_check_branch
      %44 = sbr.rel (0) target = $region17
    $region16: #{tpu_custom_call.1} parent=1 // pred_region
      %46 = vsyncadd [#allocation7], 0
      %s47 = sshll.u32 %s3, 4
      %s48 = int_to_ptr.hbm [resolvable:$true] %s47
      %s49 = sshll.u32 [#allocation8], 4
      %s50 = int_to_ptr.vmem [resolvable:$true] %s49
      %55 = dma.hbm_to_vmem [thread:$0]  %s48, 2048, %s50, [#allocation7], 128, 128, 8
    $region17: #{tpu_custom_call.1} parent=1 // pred_fallthru
      _
    // Predicated region
    $region18: #{tpu_custom_call.1} parent=1 // pred_check
      _
    $region19: #{tpu_custom_call.1} parent=1 // pred_check_branch
      %57 = sbr.rel (0) target = $region21
    $region20: #{tpu_custom_call.1} parent=1 // pred_region
      _
    $region21: #{tpu_custom_call.1} parent=1 // pred_fallthru
      _
    // Predicated region
    $region22: #{tpu_custom_call.1} parent=1 // pred_check
      _
    $region23: #{tpu_custom_call.1} parent=1 // pred_check_branch
      %59 = sbr.rel (0) target = $region25
    $region24: #{tpu_custom_call.1} parent=1 // pred_region
      _
    $region25: #{tpu_custom_call.1} parent=1 // pred_fallthru
      _
    // Predicated region
    $region26: #{tpu_custom_call.1} parent=1 // pred_check
      _
    $region27: #{tpu_custom_call.1} parent=1 // pred_check_branch
      %61 = sbr.rel (0) target = $region29
    $region28: #{tpu_custom_call.1} parent=1 // pred_region
      _
    $region29: #{tpu_custom_call.1} parent=1 // pred_fallthru
      _
    // Predicated region
    $region30: #{tpu_custom_call.1} parent=1 // pred_check
      _
    $region31: #{tpu_custom_call.1} parent=1 // pred_check_branch
      %63 = sbr.rel (0) target = $region33
    $region32: #{tpu_custom_call.1} parent=1 // pred_region
      %65 = dma.done [#allocation4], 256
    $region33: #{tpu_custom_call.1} parent=1 // pred_fallthru
      _
    // Predicated region
    $region34: #{tpu_custom_call.1} parent=1 // pred_check
      _
    $region35: #{tpu_custom_call.1} parent=1 // pred_check_branch
      %67 = sbr.rel (0) target = $region37
    $region36: #{tpu_custom_call.1} parent=1 // pred_region
      %69 = dma.done [#allocation7], 2048
    $region37: #{tpu_custom_call.1} parent=1 // pred_fallthru
      _
    // Predicated region
    $region38: #{tpu_custom_call.1} parent=1 // pred_check
      _
    $region39: #{tpu_custom_call.1} parent=1 // pred_check_branch
      %71 = sbr.rel (0) target = $region41
    $region40: #{tpu_custom_call.1} parent=1 // pred_region
      %73 = dma.done [#allocation7], 2048
    $region41: #{tpu_custom_call.1} parent=1 // pred_fallthru
      _
    %p74 = scmp.eq.s32.totalorder 0, 0
    // Predicated region
    $region42: #{tpu_custom_call.1} parent=1 // pred_check
      %p75 = pneg %p74
    $region43: #{tpu_custom_call.1} parent=1 // pred_check_branch
      %77 = sbr.rel (%p75) target = $region45
    $region44: #{tpu_custom_call.1} parent=1 // pred_region
      %78 = vst [vmem:[#allocation2] sm:$0xff] 0.0
      %79 = vst [vmem:[#allocation2 + $0x8] sm:$0xff] 0.0
    $region45: #{tpu_custom_call.1} parent=1 // pred_fallthru
      _
    %v80 = vld [vmem:[#allocation3] sm:$0xff]
    %v81 = vld [vmem:[#allocation3 + $0x8] sm:$0xff]
    %v82 = vld [vmem:[#allocation6] sm:$0xff]
    %v83 = vld [vmem:[#allocation6 + $0x8] sm:$0xff]
    %v84 = vld [vmem:[#allocation6 + $0x10] sm:$0xff]
    %v85 = vld [vmem:[#allocation6 + $0x18] sm:$0xff]
    %v86 = vld [vmem:[#allocation6 + $0x20] sm:$0xff]
    %v87 = vld [vmem:[#allocation6 + $0x28] sm:$0xff]
    %v88 = vld [vmem:[#allocation6 + $0x30] sm:$0xff]
    %v89 = vld [vmem:[#allocation6 + $0x38] sm:$0xff]
    %v90 = vld [vmem:[#allocation6 + $0x40] sm:$0xff]
    %v91 = vld [vmem:[#allocation6 + $0x48] sm:$0xff]
    %v92 = vld [vmem:[#allocation6 + $0x50] sm:$0xff]
    %v93 = vld [vmem:[#allocation6 + $0x58] sm:$0xff]
    %v94 = vld [vmem:[#allocation6 + $0x60] sm:$0xff]
    %v95 = vld [vmem:[#allocation6 + $0x68] sm:$0xff]
    %v96 = vld [vmem:[#allocation6 + $0x70] sm:$0xff]
    %v97 = vld [vmem:[#allocation6 + $0x78] sm:$0xff]
    %v98 = vld [vmem:[%s2] sm:$0x1]
    %v100 = vperm.slane %v98, 0
    %102 = vmatpush.msra.mxu0 %v97
    %103 = vmatpush.msra.mxu0 %v96
    %104 = vmatpush.msra.mxu0 %v95
    %105 = vmatpush.msra.mxu0 %v94
    %106 = vmatpush.msra.mxu0 %v93
    %107 = vmatpush.msra.mxu0 %v92
    %108 = vmatpush.msra.mxu0 %v91
    %109 = vmatpush.msra.mxu0 %v90
    %110 = vmatpush.msra.mxu0 %v89
    %111 = vmatpush.msra.mxu0 %v88
    %112 = vmatpush.msra.mxu0 %v87
    %113 = vmatpush.msra.mxu0 %v86
    %114 = vmatpush.msra.mxu0 %v85
    %115 = vmatpush.msra.mxu0 %v84
    %116 = vmatpush.msra.mxu0 %v83
    %117 = vmatpush.msra.mxu0 %v82
    %118 = vmatmul.f32.gmra.mxu0 %v80
    %v119 = vpop.f32.mrf.mxu0
    %v120 = vadd.f32 %v100, %v119
    %121 = vmatmul.f32.gmra.mxu0 %v81
    %v122 = vpop.f32.mrf.mxu0
    %v123 = vadd.f32 %v100, %v122
    %124 = vdwg.mxu0
    %v125 = vmax.f32 %v120, 0.0
    %v126 = vmax.f32 %v123, 0.0
    %v127 = vld [vmem:[#allocation2] sm:$0xff]
    %v128 = vld [vmem:[#allocation2 + $0x8] sm:$0xff]
    %v129 = vld [vmem:[#allocation8] sm:$0xff]
    %v130 = vld [vmem:[#allocation8 + $0x8] sm:$0xff]
    %v131 = vld [vmem:[#allocation8 + $0x10] sm:$0xff]
    %v132 = vld [vmem:[#allocation8 + $0x18] sm:$0xff]
    %v133 = vld [vmem:[#allocation8 + $0x20] sm:$0xff]
    %v134 = vld [vmem:[#allocation8 + $0x28] sm:$0xff]
    %v135 = vld [vmem:[#allocation8 + $0x30] sm:$0xff]
    %v136 = vld [vmem:[#allocation8 + $0x38] sm:$0xff]
    %v137 = vld [vmem:[#allocation8 + $0x40] sm:$0xff]
    %v138 = vld [vmem:[#allocation8 + $0x48] sm:$0xff]
    %v139 = vld [vmem:[#allocation8 + $0x50] sm:$0xff]
    %v140 = vld [vmem:[#allocation8 + $0x58] sm:$0xff]
    %v141 = vld [vmem:[#allocation8 + $0x60] sm:$0xff]
    %v142 = vld [vmem:[#allocation8 + $0x68] sm:$0xff]
    %v143 = vld [vmem:[#allocation8 + $0x70] sm:$0xff]
    %v144 = vld [vmem:[#allocation8 + $0x78] sm:$0xff]
    %145 = vmatpush.msra.mxu0 %v144
    %146 = vmatpush.msra.mxu0 %v143
    %147 = vmatpush.msra.mxu0 %v142
    %148 = vmatpush.msra.mxu0 %v141
    %149 = vmatpush.msra.mxu0 %v140
    %150 = vmatpush.msra.mxu0 %v139
    %151 = vmatpush.msra.mxu0 %v138
    %152 = vmatpush.msra.mxu0 %v137
    %153 = vmatpush.msra.mxu0 %v136
    %154 = vmatpush.msra.mxu0 %v135
    %155 = vmatpush.msra.mxu0 %v134
    %156 = vmatpush.msra.mxu0 %v133
    %157 = vmatpush.msra.mxu0 %v132
    %158 = vmatpush.msra.mxu0 %v131
    %159 = vmatpush.msra.mxu0 %v130
    %160 = vmatpush.msra.mxu0 %v129
    %161 = vmatmul.f32.gmra.mxu0 %v125
    %v162 = vpop.f32.mrf.mxu0
    %v163 = vadd.f32 0.0, %v162
    %164 = vmatmul.f32.gmra.mxu0 %v126
    %v165 = vpop.f32.mrf.mxu0
    %v166 = vadd.f32 0.0, %v165
    %167 = vdwg.mxu0
    %v168 = vadd.f32 %v127, %v163
    %v169 = vadd.f32 %v128, %v166
    %170 = vst [vmem:[#allocation2] sm:$0xff] %v168
    %171 = vst [vmem:[#allocation2 + $0x8] sm:$0xff] %v169
    // Predicated region
    $region46: #{tpu_custom_call.1} parent=1 // pred_check
      %p172 = pneg %p74
    $region47: #{tpu_custom_call.1} parent=1 // pred_check_branch
      %174 = sbr.rel (%p172) target = $region49
    $region48: #{tpu_custom_call.1} parent=1 // pred_region
      %v175 = vld [vmem:[#allocation2] sm:$0xff]
      %v176 = vld [vmem:[#allocation2 + $0x8] sm:$0xff]
      %v177 = vadd.f32 %v80, %v175
      %v178 = vadd.f32 %v81, %v176
      %v179 = vld [vmem:[%s4] sm:$0x1]
      %v181 = vperm.slane %v179, 0
      %v183 = vadd.f32 %v177, %v181
      %v184 = vadd.f32 %v178, %v181
      %185 = vadd.xlane.f32.xlu0 %v183
      %v186 = vpop.xlane.xlu0 %185
      %187 = vadd.xlane.f32.xlu0 %v184
      %v188 = vpop.xlane.xlu0 %187
      %v189 = vmul.f32 %v186, 0.03125
      %v190 = vmul.f32 %v188, 0.03125
      %v191 = vsub.f32 %v183, %v189
      %v192 = vsub.f32 %v184, %v190
      %v193 = vlaneseq
      %v194 = vand.u32 %v193, 127
      %vm195 = vcmp.lt.s32.totalorder %v194, 32
      %v196 = vsel %vm195, %v191, 0.0
      %v197 = vsel %vm195, %v192, 0.0
      %v198 = vmul.f32 %v196, %v196
      %v199 = vmul.f32 %v197, %v197
      %200 = vadd.xlane.f32.xlu0 %v198
      %v201 = vpop.xlane.xlu0 %200
      %202 = vadd.xlane.f32.xlu0 %v199
      %v203 = vpop.xlane.xlu0 %202
      %v204 = vmul.f32 %v201, 0.03125
      %v205 = vmul.f32 %v203, 0.03125
      %v206 = vadd.f32 %v204, 1e-05
      %v207 = vadd.f32 %v205, 1e-05
      %v208 = vrsqrt.pop %v206
      %v209 = vmul.f32 %v208, %v206
      %v210 = vmul.f32 %v209, %v208
      %v211 = vmul.f32 0.5, %v210
      %v212 = vsub.f32 1.5, %v211
      %v213 = vmul.f32 %v208, %v212
      %vm214 = vweird.f32 %v206
      %vm215 = vweird.f32 %v208
      %vm216 = vmor %vm214, %vm215
      %v217 = vsel %vm216, %v208, %v213
      %v218 = vrsqrt.pop %v207
      %v219 = vmul.f32 %v218, %v207
      %v220 = vmul.f32 %v219, %v218
      %v221 = vmul.f32 0.5, %v220
      %v222 = vsub.f32 1.5, %v221
      %v223 = vmul.f32 %v218, %v222
      %vm224 = vweird.f32 %v207
      %vm225 = vweird.f32 %v218
      %vm226 = vmor %vm224, %vm225
      %v227 = vsel %vm226, %v218, %v223
      %v228 = vmul.f32 %v196, %v217
      %v229 = vmul.f32 %v197, %v227
      %v230 = vld [vmem:[%s5] sm:$0x1]
      %v232 = vperm.slane %v230, 0
      %v234 = vmul.f32 %v228, %v232
      %v235 = vmul.f32 %v229, %v232
      %v236 = vld [vmem:[%s6] sm:$0x1]
      %v238 = vperm.slane %v236, 0
      %v240 = vadd.f32 %v234, %v238
      %v241 = vadd.f32 %v235, %v238
      %242 = vst [vmem:[#allocation9] sm:$0xff] %v240
      %243 = vst [vmem:[#allocation9 + $0x8] sm:$0xff] %v241
    $region49: #{tpu_custom_call.1} parent=1 // pred_fallthru
      _
    // Predicated region
    $region50: #{tpu_custom_call.1} parent=1 // pred_check
      _
    $region51: #{tpu_custom_call.1} parent=1 // pred_check_branch
      %245 = sbr.rel (0) target = $region53
    $region52: #{tpu_custom_call.1} parent=1 // pred_region
      %247 = vsyncadd [#allocation5], 0
      %s248 = sshll.u32 [#allocation9], 4
      %s249 = int_to_ptr.vmem [resolvable:$true] %s248
      %s250 = sshll.u32 %s7, 4
      %s251 = int_to_ptr.hbm [resolvable:$true] %s250
      %256 = dma.vmem_to_hbm [thread:$0]  %s249, 256, %s251, [#allocation5], 128, 128, 8
    $region53: #{tpu_custom_call.1} parent=1 // pred_fallthru
      _
    // Predicated region
    $region54: #{tpu_custom_call.1} parent=1 // pred_check
      _
    $region55: #{tpu_custom_call.1} parent=1 // pred_check_branch
      %258 = sbr.rel (0) target = $region57
    $region56: #{tpu_custom_call.1} parent=1 // pred_region
      %260 = dma.done [#allocation5], 256
    $region57: #{tpu_custom_call.1} parent=1 // pred_fallthru
      _
    %261 = vsyncpa [#allocation4], 1
    %262 = vsyncpa [#allocation7], 1
    %263 = vsyncpa [#allocation5], 1

</llo_original>
